<compile_context>
chip_gen: v7x
topology: tpu7x:2x2x1
jax: 0.10.0
libtpu: 0.0.40
codegen_flags: <defaults>
</compile_context>

<pallas_src>
import functools

import jax
import jax.numpy as jnp
from jax.experimental import pallas as pl
from jax.experimental.pallas import tpu as pltpu


# ----------------------------------------------------------------------------
# Helpers
# ----------------------------------------------------------------------------

def _round_up(x, m):
    return ((x + m - 1) // m) * m


def _vmem_limit_bytes():
    # Derive the scoped VMEM limit from the chip (v7x only has 64 MiB).
    try:
        cap = pltpu.get_tpu_info().vmem_capacity_bytes
    except Exception:
        cap = 64 * 1024 * 1024
    return min(int(cap * 3 // 4), 100 * 1024 * 1024)


def _tiles_for(n):
    """Pick (n_pad, TM, TK).  Tiles are sized to be safe on every generation
    (well inside v7x's 64 MiB VMEM even double-buffered)."""
    n128 = _round_up(n, 128)
    if n128 <= 512:
        # Small graph: a single tile along both axes.
        return n128, n128, n128
    tm, tk = 512, 1024          # bf16 A tile = 1 MiB; 2 MiB double-buffered
    return _round_up(n, tk), tm, tk


# ----------------------------------------------------------------------------
# Pallas kernel: one NGCF propagation layer, tiled over (rows, contraction)
# ----------------------------------------------------------------------------

def _ngcf_layer_kernel(adj_ref, ego_k_ref, ego_i_ref, w_ref, b_ref,
                       ego_out_ref, norm_out_ref, acc_ref, *, d_out_pad):
    """side    = A @ ego                      (accumulated over the K grid axis)
       pre     = concat([side, ego*side]) @ blockdiag(W_gc, W_bi) + [b_gc, b_bi]
       act     = leaky_relu(pre, 0.01)
       ego'    = act[:, :D] + act[:, D:]      (GC branch + BI branch)
       norm    = l2_normalize(ego', axis=1)
    """
    k = pl.program_id(1)

    @pl.when(k == 0)
    def _():
        acc_ref[...] = jnp.zeros_like(acc_ref)

    # Graph propagation: bf16 x bf16 -> f32 accumulate on the MXU.
    acc_ref[...] += jnp.dot(adj_ref[...], ego_k_ref[...],
                            preferred_element_type=jnp.float32)

    @pl.when(k == pl.num_programs(1) - 1)
    def _():
        side = acc_ref[...]                     # (TM, Dp) f32
        ego = ego_i_ref[...]                    # (TM, Dp) f32, this row tile
        x = jnp.concatenate([side, ego * side], axis=1)      # (TM, 2*Dp)
        pre = jnp.dot(x, w_ref[...],
                      preferred_element_type=jnp.float32) + b_ref[...]
        act = jnp.where(pre > 0, pre, 0.01 * pre)             # leaky_relu(0.01)
        ego_new = act[:, :d_out_pad] + act[:, d_out_pad:]
        ego_out_ref[...] = ego_new

        # F.normalize(p=2, dim=1, eps=1e-12) == x * rsqrt(max(sumsq, eps^2))
        sumsq = jnp.sum(ego_new * ego_new, axis=1, keepdims=True)
        inv = jax.lax.rsqrt(jnp.maximum(sumsq, 1e-24))
        norm_out_ref[...] = ego_new * inv


def ngcf_layer(adj_bf16, ego_bf16, ego_f32, w_fused, b_fused, *,
               n_pad, tm, tk, d_in_pad, d_out_pad, vmem_limit):
    grid = (n_pad // tm, n_pad // tk)
    kernel = functools.partial(_ngcf_layer_kernel, d_out_pad=d_out_pad)
    ego_new, norm_emb = pl.pallas_call(
        kernel,
        grid=grid,
        in_specs=[
            pl.BlockSpec((tm, tk), lambda i, k: (i, k)),            # A tile (bf16)
            pl.BlockSpec((tk, d_in_pad), lambda i, k: (k, 0)),      # ego, K-blocked (bf16)
            pl.BlockSpec((tm, d_in_pad), lambda i, k: (i, 0)),      # ego, row-blocked (f32)
            pl.BlockSpec((2 * d_in_pad, 2 * d_out_pad), lambda i, k: (0, 0)),
            pl.BlockSpec((1, 2 * d_out_pad), lambda i, k: (0, 0)),
        ],
        out_specs=(
            pl.BlockSpec((tm, d_out_pad), lambda i, k: (i, 0)),
            pl.BlockSpec((tm, d_out_pad), lambda i, k: (i, 0)),
        ),
        out_shape=(
            jax.ShapeDtypeStruct((n_pad, d_out_pad), jnp.float32),
            jax.ShapeDtypeStruct((n_pad, d_out_pad), jnp.float32),
        ),
        scratch_shapes=[pltpu.VMEM((tm, d_in_pad), jnp.float32)],
        compiler_params=pltpu.CompilerParams(
            dimension_semantics=("parallel", "arbitrary"),
            vmem_limit_bytes=vmem_limit),
    )(adj_bf16, ego_bf16, ego_f32, w_fused, b_fused)
    return ego_new, norm_emb


# ----------------------------------------------------------------------------
# Model glue (plain JAX)
# ----------------------------------------------------------------------------

def xavier_uniform(key, shape):
    fan_in, fan_out = shape
    bound = jnp.sqrt(6.0 / (fan_in + fan_out))
    return jax.random.uniform(key, shape, jnp.float32, -bound, bound)


def make_norm_adj(key, user_num, item_num):
    # Deterministic synthetic interaction matrix (p(interaction) = 0.1),
    # normalized as D^{-1/2} A D^{-1/2} exactly like the reference module.
    ui = (jax.random.uniform(key, (user_num, item_num)) < 0.1).astype(jnp.float32)
    n = user_num + item_num
    adj = jnp.zeros((n, n), jnp.float32)
    adj = adj.at[:user_num, user_num:].set(ui)
    adj = adj.at[user_num:, :user_num].set(ui.T)
    rowsum = adj.sum(axis=1)
    d_inv_sqrt = jnp.power(rowsum, -0.5)
    d_inv_sqrt = jnp.where(jnp.isinf(d_inv_sqrt), 0.0, d_inv_sqrt)
    return d_inv_sqrt[:, None] * adj * d_inv_sqrt[None, :]


def ngcf_forward(params, norm_adj, user_indices, item_indices, user_num):
    n = norm_adj.shape[0]
    n_pad, tm, tk = _tiles_for(n)
    vmem_limit = _vmem_limit_bytes()

    # Pad the adjacency once, cast to bf16 (f32 accumulation in the kernel).
    adj_p = jnp.zeros((n_pad, n_pad), jnp.float32)
    adj_p = adj_p.at[:n, :n].set(norm_adj).astype(jnp.bfloat16)

    ego = jnp.concatenate([params["user_emb"], params["item_emb"]], axis=0)
    d0 = ego.shape[1]
    d0_pad = _round_up(d0, 128)
    ego_p = jnp.zeros((n_pad, d0_pad), jnp.float32).at[:n, :d0].set(ego)

    all_embeddings = [ego]
    for k_layer in range(len(params["W_gc"])):
        w_gc, b_gc = params["W_gc"][k_layer], params["b_gc"][k_layer]
        w_bi, b_bi = params["W_bi"][k_layer], params["b_bi"][k_layer]
        d_in, d_out = w_gc.shape
        d_in_pad = _round_up(d_in, 128)
        d_out_pad = _round_up(d_out, 128)
        assert ego_p.shape[1] == d_in_pad

        # Fused block-diagonal weight / concatenated bias (zero padded so the
        # padded feature columns of the output stay exactly zero).
        w_f = jnp.zeros((2 * d_in_pad, 2 * d_out_pad), jnp.float32)
        w_f = w_f.at[:d_in, :d_out].set(w_gc)
        w_f = w_f.at[d_in_pad:d_in_pad + d_in,
                     d_out_pad:d_out_pad + d_out].set(w_bi)
        b_f = jnp.zeros((1, 2 * d_out_pad), jnp.float32)
        b_f = b_f.at[:, :d_out].set(b_gc)
        b_f = b_f.at[:, d_out_pad:d_out_pad + d_out].set(b_bi)

        ego_p, norm_p = ngcf_layer(
            adj_p, ego_p.astype(jnp.bfloat16), ego_p, w_f, b_f,
            n_pad=n_pad, tm=tm, tk=tk,
            d_in_pad=d_in_pad, d_out_pad=d_out_pad,
            vmem_limit=vmem_limit)
        # TODO(synk): F.dropout on ego between layers is skipped (eval mode).
        all_embeddings.append(norm_p[:n, :d_out])

    all_embeddings = jnp.concatenate(all_embeddings, axis=1)
    u_g = all_embeddings[:user_num]
    i_g = all_embeddings[user_num:]
    user_e = u_g[user_indices]
    item_e = i_g[item_indices]
    # Score is sub-vreg work -> plain JAX (XLA fuses it; avoids a kernel launch
    # and a (B,1) masked-store round trip).
    return jax.nn.sigmoid(jnp.sum(user_e * item_e, axis=1))


# ----------------------------------------------------------------------------
# Main
# ----------------------------------------------------------------------------

if __name__ == "__main__":
    key = jax.random.PRNGKey(0)
    user_num, item_num = 24, 40
    emb_dim = 32
    layer_size = [32, 32]          # 2 propagation layers
    batch = 8

    keys = jax.random.split(key, 16)

    norm_adj = make_norm_adj(keys[0], user_num, item_num)

    weight_size_list = [emb_dim] + layer_size
    params = {
        "user_emb": xavier_uniform(keys[1], (user_num, emb_dim)),
        "item_emb": xavier_uniform(keys[2], (item_num, emb_dim)),
        "W_gc": [], "b_gc": [], "W_bi": [], "b_bi": [],
    }
    for k in range(len(layer_size)):
        d_in, d_out = weight_size_list[k], weight_size_list[k + 1]
        params["W_gc"].append(xavier_uniform(keys[3 + 4 * k], (d_in, d_out)))
        params["b_gc"].append(jnp.zeros((1, d_out), jnp.float32))
        params["W_bi"].append(xavier_uniform(keys[4 + 4 * k], (d_in, d_out)))
        params["b_bi"].append(jnp.zeros((1, d_out), jnp.float32))

    user_indices = jax.random.randint(keys[12], (batch,), 0, user_num)
    item_indices = jax.random.randint(keys[13], (batch,), 0, item_num)

    pred_scores = ngcf_forward(params, norm_adj, user_indices, item_indices,
                               user_num)
    jax.block_until_ready(pred_scores)

    assert pred_scores.shape == (batch,)
    assert bool(jnp.all(jnp.isfinite(pred_scores)))
    print("KERNEL_OK")
</pallas_src>

<mosaic_0001>
module attributes {stable_mosaic.version = 11 : i64} {
  func.func @_ngcf_layer_kernel(%arg0: i32, %arg1: i32, %arg2: memref<128x128xbf16, #tpu.memory_space<vmem>>, %arg3: memref<128x128xbf16, #tpu.memory_space<vmem>>, %arg4: memref<128x128xf32, #tpu.memory_space<vmem>>, %arg5: memref<256x256xf32, #tpu.memory_space<vmem>>, %arg6: memref<1x256xf32, #tpu.memory_space<vmem>>, %arg7: memref<128x128xf32, #tpu.memory_space<vmem>>, %arg8: memref<128x128xf32, #tpu.memory_space<vmem>>, %arg9: memref<128x128xf32, #tpu.memory_space<vmem>>) attributes {dimension_semantics = [#tpu.dimension_semantics<parallel>, #tpu.dimension_semantics<arbitrary>], iteration_bounds = array<i64: 1, 1>, scalar_prefetch = 0 : i64, scratch_operands = 1 : i64, tpu.core_type = #tpu.core_type<tc>, window_params = [{transform_indices = @transform_0, window_bounds = array<i64: 128, 128>}, {transform_indices = @transform_1, window_bounds = array<i64: 128, 128>}, {transform_indices = @transform_2, window_bounds = array<i64: 128, 128>}, {pipeline_mode = #tpu.pipeline_mode<synchronous>, transform_indices = @transform_3, window_bounds = array<i64: 256, 256>}, {pipeline_mode = #tpu.pipeline_mode<synchronous>, transform_indices = @transform_4, window_bounds = array<i64: 1, 256>}, {transform_indices = @transform_5, window_bounds = array<i64: 128, 128>}, {transform_indices = @transform_6, window_bounds = array<i64: 128, 128>}]} {
    %c0_i32 = arith.constant 0 : i32
    %0 = arith.cmpi eq, %arg1, %c0_i32 : i32
    %1 = arith.extui %0 : i1 to i32
    %c0_i32_0 = arith.constant 0 : i32
    %2 = arith.cmpi ne, %1, %c0_i32_0 : i32
    scf.if %2 {
      %cst_10 = arith.constant 0.000000e+00 : f32
      %12 = vector.broadcast %cst_10 : f32 to vector<128x128xf32>
      %c0_11 = arith.constant 0 : index
      %c0_12 = arith.constant 0 : index
      %13 = vector.load %arg9[%c0_11, %c0_12] : memref<128x128xf32, #tpu.memory_space<vmem>>, vector<128x128xf32>
      tpu.vector_store %arg9[%c0_11, %c0_12], %12 {strides = array<i32>} : memref<128x128xf32, #tpu.memory_space<vmem>>, vector<128x128xf32>,
    } else {
    }
    %c0 = arith.constant 0 : index
    %c0_1 = arith.constant 0 : index
    %3 = vector.load %arg9[%c0, %c0_1] : memref<128x128xf32, #tpu.memory_space<vmem>>, vector<128x128xf32>
    %c0_2 = arith.constant 0 : index
    %c0_3 = arith.constant 0 : index
    %4 = vector.load %arg2[%c0_2, %c0_3] : memref<128x128xbf16, #tpu.memory_space<vmem>>, vector<128x128xbf16>
    %c0_4 = arith.constant 0 : index
    %c0_5 = arith.constant 0 : index
    %5 = vector.load %arg3[%c0_4, %c0_5] : memref<128x128xbf16, #tpu.memory_space<vmem>>, vector<128x128xbf16>
    %cst = arith.constant dense<0.000000e+00> : vector<128x128xf32>
    %6 = tpu.matmul %4, %5, %cst {dimension_numbers = #tpu.dot_dimension_numbers<[1], [0], [0], [1], [0, 0, 1, 1], [], []>} : vector<128x128xbf16>, vector<128x128xbf16>, vector<128x128xf32> -> vector<128x128xf32>
    %7 = arith.addf %3, %6 : vector<128x128xf32>
    %c0_6 = arith.constant 0 : index
    %c0_7 = arith.constant 0 : index
    %8 = vector.load %arg9[%c0_6, %c0_7] : memref<128x128xf32, #tpu.memory_space<vmem>>, vector<128x128xf32>
    tpu.vector_store %arg9[%c0_6, %c0_7], %7 {strides = array<i32>} : memref<128x128xf32, #tpu.memory_space<vmem>>, vector<128x128xf32>,
    %c0_i32_8 = arith.constant 0 : i32
    %9 = arith.cmpi eq, %arg1, %c0_i32_8 : i32
    %10 = arith.extui %9 : i1 to i32
    %c0_i32_9 = arith.constant 0 : i32
    %11 = arith.cmpi ne, %10, %c0_i32_9 : i32
    scf.if %11 {
      %c0_10 = arith.constant 0 : index
      %c0_11 = arith.constant 0 : index
      %12 = vector.load %arg9[%c0_10, %c0_11] : memref<128x128xf32, #tpu.memory_space<vmem>>, vector<128x128xf32>
      %c0_12 = arith.constant 0 : index
      %c0_13 = arith.constant 0 : index
      %13 = vector.load %arg4[%c0_12, %c0_13] : memref<128x128xf32, #tpu.memory_space<vmem>>, vector<128x128xf32>
      %14 = arith.mulf %13, %12 : vector<128x128xf32>
      %15 = tpu.concatenate %12, %14 in 1 : vector<128x128xf32>, vector<128x128xf32> -> vector<128x256xf32>
      %c0_14 = arith.constant 0 : index
      %c0_15 = arith.constant 0 : index
      %16 = vector.load %arg5[%c0_14, %c0_15] : memref<256x256xf32, #tpu.memory_space<vmem>>, vector<256x256xf32>
      %cst_16 = arith.constant dense<0.000000e+00> : vector<128x256xf32>
      %17 = tpu.matmul %15, %16, %cst_16 {dimension_numbers = #tpu.dot_dimension_numbers<[1], [0], [0], [1], [0, 0, 1, 1], [], []>} : vector<128x256xf32>, vector<256x256xf32>, vector<128x256xf32> -> vector<128x256xf32>
      %c0_17 = arith.constant 0 : index
      %c0_18 = arith.constant 0 : index
      %18 = vector.load %arg6[%c0_17, %c0_18] : memref<1x256xf32, #tpu.memory_space<vmem>>, vector<1x256xf32>
      %19 = vector.broadcast %18 : vector<1x256xf32> to vector<128x256xf32>
      %20 = arith.addf %17, %19 : vector<128x256xf32>
      %cst_19 = arith.constant 0.000000e+00 : f32
      %21 = vector.broadcast %cst_19 : f32 to vector<128x256xf32>
      %22 = arith.cmpf ogt, %20, %21 : vector<128x256xf32>
      %cst_20 = arith.constant 0.00999999977 : f32
      %23 = vector.broadcast %cst_20 : f32 to vector<128x256xf32>
      %24 = arith.mulf %23, %20 : vector<128x256xf32>
      %25 = arith.select %22, %20, %24 : vector<128x256xi1>, vector<128x256xf32>
      %26 = vector.extract_strided_slice %25 {offsets = [0, 0], sizes = [128, 128], strides = [1, 1]} : vector<128x256xf32> to vector<128x128xf32>
      %27 = vector.extract_strided_slice %25 {offsets = [0, 128], sizes = [128, 128], strides = [1, 1]} : vector<128x256xf32> to vector<128x128xf32>
      %28 = arith.addf %26, %27 : vector<128x128xf32>
      %c0_21 = arith.constant 0 : index
      %c0_22 = arith.constant 0 : index
      %29 = vector.load %arg7[%c0_21, %c0_22] : memref<128x128xf32, #tpu.memory_space<vmem>>, vector<128x128xf32>
      tpu.vector_store %arg7[%c0_21, %c0_22], %28 {strides = array<i32>} : memref<128x128xf32, #tpu.memory_space<vmem>>, vector<128x128xf32>,
      %30 = arith.mulf %28, %28 : vector<128x128xf32>
      %cst_23 = arith.constant dense<0.000000e+00> : vector<128xf32>
      %31 = vector.multi_reduction <add>, %30, %cst_23 [1] : vector<128x128xf32> to vector<128xf32>
      %32 = vector.shape_cast %31 : vector<128xf32> to vector<128x1xf32>
      %cst_24 = arith.constant 1.000000e-24 : f32
      %33 = vector.broadcast %cst_24 : f32 to vector<128x1xf32>
      %34 = arith.maximumf %32, %33 : vector<128x1xf32>
      %35 = math.rsqrt %34 : vector<128x1xf32>
      %36 = vector.broadcast %35 : vector<128x1xf32> to vector<128x128xf32>
      %37 = arith.mulf %28, %36 : vector<128x128xf32>
      %c0_25 = arith.constant 0 : index
      %c0_26 = arith.constant 0 : index
      %38 = vector.load %arg8[%c0_25, %c0_26] : memref<128x128xf32, #tpu.memory_space<vmem>>, vector<128x128xf32>
      tpu.vector_store %arg8[%c0_25, %c0_26], %37 {strides = array<i32>} : memref<128x128xf32, #tpu.memory_space<vmem>>, vector<128x128xf32>,
    } else {
    }
    return
  }
  func.func @transform_0(%arg0: i32, %arg1: i32) -> (i32, i32) {
    %c0_i32 = arith.constant 0 : i32
    return %arg0, %arg1 : i32, i32
  }
  func.func @transform_1(%arg0: i32, %arg1: i32) -> (i32, i32) {
    %c0_i32 = arith.constant 0 : i32
    %c0_i32_0 = arith.constant 0 : i32
    return %arg1, %c0_i32 : i32, i32
  }
  func.func @transform_2(%arg0: i32, %arg1: i32) -> (i32, i32) {
    %c0_i32 = arith.constant 0 : i32
    %c0_i32_0 = arith.constant 0 : i32
    return %arg0, %c0_i32 : i32, i32
  }
  func.func @transform_3(%arg0: i32, %arg1: i32) -> (i32, i32) {
    %c0_i32 = arith.constant 0 : i32
    %c0_i32_0 = arith.constant 0 : i32
    %c0_i32_1 = arith.constant 0 : i32
    return %c0_i32, %c0_i32_0 : i32, i32
  }
  func.func @transform_4(%arg0: i32, %arg1: i32) -> (i32, i32) {
    %c0_i32 = arith.constant 0 : i32
    %c0_i32_0 = arith.constant 0 : i32
    %c0_i32_1 = arith.constant 0 : i32
    return %c0_i32, %c0_i32_0 : i32, i32
  }
  func.func @transform_5(%arg0: i32, %arg1: i32) -> (i32, i32) {
    %c0_i32 = arith.constant 0 : i32
    %c0_i32_0 = arith.constant 0 : i32
    return %arg0, %c0_i32 : i32, i32
  }
  func.func @transform_6(%arg0: i32, %arg1: i32) -> (i32, i32) {
    %c0_i32 = arith.constant 0 : i32
    %c0_i32_0 = arith.constant 0 : i32
    return %arg0, %c0_i32 : i32, i32
  }
}

</mosaic_0001>

<llo_original>
// kernel: tpu_custom_call.1
$region0: #{tpu_custom_call.1}
  #allocation0 [shape = 'u32[]', space=smem, size = 0x4, offset = 0x4, fixed_abs, tag = 'smem constant byte address 0x4 - core index']
  #allocation1 [shape = 'u32[144,128]{1,0:T(1,128)}', space=vmem, size = 0x12000, scoped, tag = 'internal scratch']
  #allocation2 [shape = 'f32[128,128]{1,0:T(8,128)}', space=vmem, size = 0x10000, scoped, tag = 'scratch operand']
  %s0 = inlined_call_operand.hbm [shape: bf16[128,128], index: 0, kind: input, shape index: {}]
  %s1 = inlined_call_operand.hbm [shape: bf16[128,128], index: 1, kind: input, shape index: {}]
  %s2 = inlined_call_operand.hbm [shape: f32[128,128], index: 2, kind: input, shape index: {}]
  %s3 = inlined_call_operand.hbm [shape: f32[256,256], index: 3, kind: input, shape index: {}]
  %s4 = inlined_call_operand.vmem [shape: f32[1,256], index: 4, kind: input, shape index: {}]
  %s5 = inlined_call_operand.hbm [shape: f32[128,128], index: 5, kind: output, shape index: {0}]
  %s6 = inlined_call_operand.hbm [shape: f32[128,128], index: 6, kind: output, shape index: {1}]
  %7 = xla_tuple %s5, %s6
  %s8 = sld [smem:[#allocation0]]
  $region62: #{tpu_custom_call.1} parent=0
    _
  %s10 = ssub.s32 1, %s8
  %s11 = scalar_select 0, %s10, %s8
  $region1: #{tpu_custom_call.1} parent=0
    #allocation3 [shape = 'u8[32768]{0}', space=vmem, size = 0x8000, scoped, tag = 'input window, operand 0, single buffered']
    #allocation4 [shape = 's32[1]{0}', space=sflag, size = 0x4, scoped, tag = 'scoped memory for tpu_custom_call.1']
    #allocation5 [shape = 's32[1]{0}', space=sflag, size = 0x4, scoped, tag = 'scoped memory for tpu_custom_call.1']
    #allocation6 [shape = 'u8[32768]{0}', space=vmem, size = 0x8000, scoped, tag = 'input window, operand 1, single buffered']
    #allocation7 [shape = 's32[1]{0}', space=sflag, size = 0x4, scoped, tag = 'scoped memory for tpu_custom_call.1']
    #allocation8 [shape = 'u8[65536]{0}', space=vmem, size = 0x10000, scoped, tag = 'input window, operand 2, single buffered']
    #allocation9 [shape = 'u8[262144]{0}', space=vmem, size = 0x40000, scoped, tag = 'input window, operand 3, single buffered']
    #allocation10 [shape = 's32[1]{0}', space=sflag, size = 0x4, scoped, tag = 'scoped memory for tpu_custom_call.1']
    #allocation11 [shape = 'u8[65536]{0}', space=vmem, size = 0x10000, scoped, tag = 'output window, operand 0, single buffered']
    #allocation12 [shape = 'u8[65536]{0}', space=vmem, size = 0x10000, scoped, tag = 'output window, operand 1, single buffered']
    #allocation13 [shape = 's32[1]{0}', space=sflag, size = 0x4, scoped, tag = 'scoped memory for tpu_custom_call.1']
    %12 = vsyncpa [#allocation4], 0
    %13 = vsyncpa [#allocation7], 0
    %14 = vsyncpa [#allocation10], 0
    %15 = vsyncpa [#allocation5], 0
    %16 = vsyncpa [#allocation13], 0
    // Predicated region
    $region2: #{tpu_custom_call.1} parent=1 // pred_check
      _
    $region3: #{tpu_custom_call.1} parent=1 // pred_check_branch
      %18 = sbr.rel (0) target = $region5
    $region4: #{tpu_custom_call.1} parent=1 // pred_region
      %s20 = ssub.s32 1024, 1024
      %21 = vsyncadd [#allocation4], %s20
      %s22 = sshll.u32 [#allocation3], 4
      %s23 = int_to_ptr.vmem [resolvable:$true] %s22
      %28 = dma.hbm_to_vmem [thread:$0]  %s0, 1024, %s23, [#allocation4], 64, 64, 4
    $region5: #{tpu_custom_call.1} parent=1 // pred_fallthru
      _
    // Predicated region
    $region6: #{tpu_custom_call.1} parent=1 // pred_check
      _
    $region7: #{tpu_custom_call.1} parent=1 // pred_check_branch
      %30 = sbr.rel (0) target = $region9
    $region8: #{tpu_custom_call.1} parent=1 // pred_region
      %s32 = ssub.s32 1024, 1024
      %33 = vsyncadd [#allocation7], %s32
      %s34 = sshll.u32 [#allocation6], 4
      %s35 = int_to_ptr.vmem [resolvable:$true] %s34
      %40 = dma.hbm_to_vmem [thread:$0]  %s1, 1024, %s35, [#allocation7], 64, 64, 4
    $region9: #{tpu_custom_call.1} parent=1 // pred_fallthru
      _
    // Predicated region
    $region10: #{tpu_custom_call.1} parent=1 // pred_check
      _
    $region11: #{tpu_custom_call.1} parent=1 // pred_check_branch
      %42 = sbr.rel (0) target = $region13
    $region12: #{tpu_custom_call.1} parent=1 // pred_region
      %s44 = ssub.s32 2048, 2048
      %45 = vsyncadd [#allocation7], %s44
      %s46 = sshll.u32 [#allocation8], 4
      %s47 = int_to_ptr.vmem [resolvable:$true] %s46
      %52 = dma.hbm_to_vmem [thread:$0]  %s2, 2048, %s47, [#allocation7], 128, 128, 8
    $region13: #{tpu_custom_call.1} parent=1 // pred_fallthru
      _
    // Predicated region
    $region14: #{tpu_custom_call.1} parent=1 // pred_check
      _
    $region15: #{tpu_custom_call.1} parent=1 // pred_check_branch
      %54 = sbr.rel (0) target = $region17
    $region16: #{tpu_custom_call.1} parent=1 // pred_region
      %s56 = ssub.s32 8192, 8192
      %57 = vsyncadd [#allocation10], %s56
      %s58 = sshll.u32 [#allocation9], 4
      %s59 = int_to_ptr.vmem [resolvable:$true] %s58
      %64 = dma.hbm_to_vmem [thread:$0]  %s3, 8192, %s59, [#allocation10], 256, 256, 16
    $region17: #{tpu_custom_call.1} parent=1 // pred_fallthru
      _
    // Predicated region
    $region18: #{tpu_custom_call.1} parent=1 // pred_check
      _
    $region19: #{tpu_custom_call.1} parent=1 // pred_check_branch
      %66 = sbr.rel (0) target = $region21
    $region20: #{tpu_custom_call.1} parent=1 // pred_region
      _
    $region21: #{tpu_custom_call.1} parent=1 // pred_fallthru
      _
    // Predicated region
    $region22: #{tpu_custom_call.1} parent=1 // pred_check
      _
    $region23: #{tpu_custom_call.1} parent=1 // pred_check_branch
      %68 = sbr.rel (0) target = $region25
    $region24: #{tpu_custom_call.1} parent=1 // pred_region
      %69 = dma.done [#allocation4], 1024
    $region25: #{tpu_custom_call.1} parent=1 // pred_fallthru
      _
    // Predicated region
    $region26: #{tpu_custom_call.1} parent=1 // pred_check
      _
    $region27: #{tpu_custom_call.1} parent=1 // pred_check_branch
      %71 = sbr.rel (0) target = $region29
    $region28: #{tpu_custom_call.1} parent=1 // pred_region
      %72 = dma.done [#allocation7], 1024
    $region29: #{tpu_custom_call.1} parent=1 // pred_fallthru
      _
    // Predicated region
    $region30: #{tpu_custom_call.1} parent=1 // pred_check
      _
    $region31: #{tpu_custom_call.1} parent=1 // pred_check_branch
      %74 = sbr.rel (0) target = $region33
    $region32: #{tpu_custom_call.1} parent=1 // pred_region
      %75 = dma.done [#allocation7], 2048
    $region33: #{tpu_custom_call.1} parent=1 // pred_fallthru
      _
    // Predicated region
    $region34: #{tpu_custom_call.1} parent=1 // pred_check
      _
    $region35: #{tpu_custom_call.1} parent=1 // pred_check_branch
      %77 = sbr.rel (0) target = $region37
    $region36: #{tpu_custom_call.1} parent=1 // pred_region
      %78 = dma.done [#allocation10], 8192
    $region37: #{tpu_custom_call.1} parent=1 // pred_fallthru
      _
    %p80 = scmp.eq.s32.totalorder 0, 0
    // Predicated region
    $region38: #{tpu_custom_call.1} parent=1 // pred_check
      %p81 = pneg %p80
    $region39: #{tpu_custom_call.1} parent=1 // pred_check_branch
      %83 = sbr.rel (%p81) target = $region41
    $region40: #{tpu_custom_call.1} parent=1 // pred_region
      %84 = vst [vmem:[#allocation2] sm:$0xff] 0.0
      %85 = vst [vmem:[#allocation2 + $0x8] sm:$0xff] 0.0
      %86 = vst [vmem:[#allocation2 + $0x10] sm:$0xff] 0.0
      %87 = vst [vmem:[#allocation2 + $0x18] sm:$0xff] 0.0
      %88 = vst [vmem:[#allocation2 + $0x20] sm:$0xff] 0.0
      %89 = vst [vmem:[#allocation2 + $0x28] sm:$0xff] 0.0
      %90 = vst [vmem:[#allocation2 + $0x30] sm:$0xff] 0.0
      %91 = vst [vmem:[#allocation2 + $0x38] sm:$0xff] 0.0
      %92 = vst [vmem:[#allocation2 + $0x40] sm:$0xff] 0.0
      %93 = vst [vmem:[#allocation2 + $0x48] sm:$0xff] 0.0
      %94 = vst [vmem:[#allocation2 + $0x50] sm:$0xff] 0.0
      %95 = vst [vmem:[#allocation2 + $0x58] sm:$0xff] 0.0
      %96 = vst [vmem:[#allocation2 + $0x60] sm:$0xff] 0.0
      %97 = vst [vmem:[#allocation2 + $0x68] sm:$0xff] 0.0
      %98 = vst [vmem:[#allocation2 + $0x70] sm:$0xff] 0.0
      %99 = vst [vmem:[#allocation2 + $0x78] sm:$0xff] 0.0
    $region41: #{tpu_custom_call.1} parent=1 // pred_fallthru
      _
    %v100 = vld [vmem:[#allocation2] sm:$0xff]
    %v101 = vld [vmem:[#allocation2 + $0x8] sm:$0xff]
    %v102 = vld [vmem:[#allocation2 + $0x10] sm:$0xff]
    %v103 = vld [vmem:[#allocation2 + $0x18] sm:$0xff]
    %v104 = vld [vmem:[#allocation2 + $0x20] sm:$0xff]
    %v105 = vld [vmem:[#allocation2 + $0x28] sm:$0xff]
    %v106 = vld [vmem:[#allocation2 + $0x30] sm:$0xff]
    %v107 = vld [vmem:[#allocation2 + $0x38] sm:$0xff]
    %v108 = vld [vmem:[#allocation2 + $0x40] sm:$0xff]
    %v109 = vld [vmem:[#allocation2 + $0x48] sm:$0xff]
    %v110 = vld [vmem:[#allocation2 + $0x50] sm:$0xff]
    %v111 = vld [vmem:[#allocation2 + $0x58] sm:$0xff]
    %v112 = vld [vmem:[#allocation2 + $0x60] sm:$0xff]
    %v113 = vld [vmem:[#allocation2 + $0x68] sm:$0xff]
    %v114 = vld [vmem:[#allocation2 + $0x70] sm:$0xff]
    %v115 = vld [vmem:[#allocation2 + $0x78] sm:$0xff]
    %v116 = vld [vmem:[#allocation3] sm:$0xf]
    %v117 = vld [vmem:[#allocation3 + $0x4] sm:$0xf]
    %v118 = vld [vmem:[#allocation3 + $0x8] sm:$0xf]
    %v119 = vld [vmem:[#allocation3 + $0xc] sm:$0xf]
    %v120 = vld [vmem:[#allocation3 + $0x10] sm:$0xf]
    %v121 = vld [vmem:[#allocation3 + $0x14] sm:$0xf]
    %v122 = vld [vmem:[#allocation3 + $0x18] sm:$0xf]
    %v123 = vld [vmem:[#allocation3 + $0x1c] sm:$0xf]
    %v124 = vld [vmem:[#allocation3 + $0x20] sm:$0xf]
    %v125 = vld [vmem:[#allocation3 + $0x24] sm:$0xf]
    %v126 = vld [vmem:[#allocation3 + $0x28] sm:$0xf]
    %v127 = vld [vmem:[#allocation3 + $0x2c] sm:$0xf]
    %v128 = vld [vmem:[#allocation3 + $0x30] sm:$0xf]
    %v129 = vld [vmem:[#allocation3 + $0x34] sm:$0xf]
    %v130 = vld [vmem:[#allocation3 + $0x38] sm:$0xf]
    %v131 = vld [vmem:[#allocation3 + $0x3c] sm:$0xf]
    %v132 = vld [vmem:[#allocation6] sm:$0xf]
    %v133 = vld [vmem:[#allocation6 + $0x4] sm:$0xf]
    %v134 = vld [vmem:[#allocation6 + $0x8] sm:$0xf]
    %v135 = vld [vmem:[#allocation6 + $0xc] sm:$0xf]
    %v136 = vld [vmem:[#allocation6 + $0x10] sm:$0xf]
    %v137 = vld [vmem:[#allocation6 + $0x14] sm:$0xf]
    %v138 = vld [vmem:[#allocation6 + $0x18] sm:$0xf]
    %v139 = vld [vmem:[#allocation6 + $0x1c] sm:$0xf]
    %v140 = vld [vmem:[#allocation6 + $0x20] sm:$0xf]
    %v141 = vld [vmem:[#allocation6 + $0x24] sm:$0xf]
    %v142 = vld [vmem:[#allocation6 + $0x28] sm:$0xf]
    %v143 = vld [vmem:[#allocation6 + $0x2c] sm:$0xf]
    %v144 = vld [vmem:[#allocation6 + $0x30] sm:$0xf]
    %v145 = vld [vmem:[#allocation6 + $0x34] sm:$0xf]
    %v146 = vld [vmem:[#allocation6 + $0x38] sm:$0xf]
    %v147 = vld [vmem:[#allocation6 + $0x3c] sm:$0xf]
    %v164 = vunpack.c.l.b16 %v116
    %v165 = vunpack.c.l.b16 %v117
    %v166 = vunpack.c.l.b16 %v118
    %v167 = vunpack.c.l.b16 %v119
    %v168 = vunpack.c.l.b16 %v120
    %v169 = vunpack.c.l.b16 %v121
    %v170 = vunpack.c.l.b16 %v122
    %v171 = vunpack.c.l.b16 %v123
    %v172 = vunpack.c.l.b16 %v124
    %v173 = vunpack.c.l.b16 %v125
    %v174 = vunpack.c.l.b16 %v126
    %v175 = vunpack.c.l.b16 %v127
    %v176 = vunpack.c.l.b16 %v128
    %v177 = vunpack.c.l.b16 %v129
    %v178 = vunpack.c.l.b16 %v130
    %v179 = vunpack.c.l.b16 %v131
    %v180 = vpack.c.b16 %v165, %v164
    %v181 = vpack.c.b16 %v167, %v166
    %v182 = vpack.c.b16 %v169, %v168
    %v183 = vpack.c.b16 %v171, %v170
    %v184 = vpack.c.b16 %v173, %v172
    %v185 = vpack.c.b16 %v175, %v174
    %v186 = vpack.c.b16 %v177, %v176
    %v187 = vpack.c.b16 %v179, %v178
    %v212 = vunpack.c.l.b16 %v132
    %v213 = vunpack.c.l.b16 %v133
    %v214 = vunpack.c.l.b16 %v134
    %v215 = vunpack.c.l.b16 %v135
    %v216 = vunpack.c.l.b16 %v136
    %v217 = vunpack.c.l.b16 %v137
    %v218 = vunpack.c.l.b16 %v138
    %v219 = vunpack.c.l.b16 %v139
    %v220 = vunpack.c.l.b16 %v140
    %v221 = vunpack.c.l.b16 %v141
    %v222 = vunpack.c.l.b16 %v142
    %v223 = vunpack.c.l.b16 %v143
    %v224 = vunpack.c.l.b16 %v144
    %v225 = vunpack.c.l.b16 %v145
    %v226 = vunpack.c.l.b16 %v146
    %v227 = vunpack.c.l.b16 %v147
    %v228 = vpack.c.b16 %v213, %v212
    %v229 = vpack.c.b16 %v215, %v214
    %v230 = vpack.c.b16 %v217, %v216
    %v231 = vpack.c.b16 %v219, %v218
    %v232 = vpack.c.b16 %v221, %v220
    %v233 = vpack.c.b16 %v223, %v222
    %v234 = vpack.c.b16 %v225, %v224
    %v235 = vpack.c.b16 %v227, %v226
    %244 = vmatprep.subr.bf16.mxu0 0
    %245 = vmatpush1.bf16.msra.mxu0 %v228
    %246 = vmatprep.subr.bf16.mxu0 0
    %247 = vmatpush1.bf16.msra.mxu0 %v229
    %248 = vmatprep.subr.bf16.mxu0 0
    %249 = vmatpush1.bf16.msra.mxu0 %v230
    %250 = vmatprep.subr.bf16.mxu0 0
    %251 = vmatpush1.bf16.msra.mxu0 %v231
    %252 = vmatprep.subr.bf16.mxu0 0
    %253 = vmatpush1.bf16.msra.mxu0 %v232
    %254 = vmatprep.subr.bf16.mxu0 0
    %255 = vmatpush1.bf16.msra.mxu0 %v233
    %256 = vmatprep.subr.bf16.mxu0 0
    %257 = vmatpush1.bf16.msra.mxu0 %v234
    %258 = vmatprep.subr.bf16.mxu0 0
    %259 = vmatpush1.bf16.msra.mxu0 %v235
    %260 = vmatprep.subr.bf16.mxu0 0
    %261 = vmatpush1.bf16.msra.mxu0 0
    %262 = vmatprep.subr.bf16.mxu0 0
    %263 = vmatpush1.bf16.msra.mxu0 0
    %264 = vmatprep.subr.bf16.mxu0 0
    %265 = vmatpush1.bf16.msra.mxu0 0
    %266 = vmatprep.subr.bf16.mxu0 0
    %267 = vmatpush1.bf16.msra.mxu0 0
    %268 = vmatprep.subr.bf16.mxu0 0
    %269 = vmatpush1.bf16.msra.mxu0 0
    %270 = vmatprep.subr.bf16.mxu0 0
    %271 = vmatpush1.bf16.msra.mxu0 0
    %272 = vmatprep.subr.bf16.mxu0 0
    %273 = vmatpush1.bf16.msra.mxu0 0
    %274 = vmatprep.subr.bf16.mxu0 0
    %275 = vmatpush1.bf16.msra.mxu0 0
    %276 = vmatprep.mubr.bf16.mxu0 0
    %277 = vmatmul.mubr.bf16.gmra.mrb[0].mxu0 %v180
    %v278 = vpop.f32.mrb[0].mxu0
    %v279 = vadd.f32 0.0, %v278
    %v280 = vpop.f32.mrb[0].mxu0
    %v281 = vpop.f32.mrb[0].mxu0
    %v282 = vadd.f32 0.0, %v281
    %v283 = vpop.f32.mrb[0].mxu0
    %284 = vmatprep.mubr.bf16.mxu0 0
    %285 = vmatmul.mubr.bf16.gmra.mrb[0].mxu0 %v181
    %v286 = vpop.f32.mrb[0].mxu0
    %v287 = vadd.f32 0.0, %v286
    %v288 = vpop.f32.mrb[0].mxu0
    %v289 = vpop.f32.mrb[0].mxu0
    %v290 = vadd.f32 0.0, %v289
    %v291 = vpop.f32.mrb[0].mxu0
    %292 = vmatprep.mubr.bf16.mxu0 0
    %293 = vmatmul.mubr.bf16.gmra.mrb[0].mxu0 %v182
    %v294 = vpop.f32.mrb[0].mxu0
    %v295 = vadd.f32 0.0, %v294
    %v296 = vpop.f32.mrb[0].mxu0
    %v297 = vpop.f32.mrb[0].mxu0
    %v298 = vadd.f32 0.0, %v297
    %v299 = vpop.f32.mrb[0].mxu0
    %300 = vmatprep.mubr.bf16.mxu0 0
    %301 = vmatmul.mubr.bf16.gmra.mrb[0].mxu0 %v183
    %v302 = vpop.f32.mrb[0].mxu0
    %v303 = vadd.f32 0.0, %v302
    %v304 = vpop.f32.mrb[0].mxu0
    %v305 = vpop.f32.mrb[0].mxu0
    %v306 = vadd.f32 0.0, %v305
    %v307 = vpop.f32.mrb[0].mxu0
    %308 = vmatprep.mubr.bf16.mxu0 0
    %309 = vmatmul.mubr.bf16.gmra.mrb[0].mxu0 %v184
    %v310 = vpop.f32.mrb[0].mxu0
    %v311 = vadd.f32 0.0, %v310
    %v312 = vpop.f32.mrb[0].mxu0
    %v313 = vpop.f32.mrb[0].mxu0
    %v314 = vadd.f32 0.0, %v313
    %v315 = vpop.f32.mrb[0].mxu0
    %316 = vmatprep.mubr.bf16.mxu0 0
    %317 = vmatmul.mubr.bf16.gmra.mrb[0].mxu0 %v185
    %v318 = vpop.f32.mrb[0].mxu0
    %v319 = vadd.f32 0.0, %v318
    %v320 = vpop.f32.mrb[0].mxu0
    %v321 = vpop.f32.mrb[0].mxu0
    %v322 = vadd.f32 0.0, %v321
    %v323 = vpop.f32.mrb[0].mxu0
    %324 = vmatprep.mubr.bf16.mxu0 0
    %325 = vmatmul.mubr.bf16.gmra.mrb[0].mxu0 %v186
    %v326 = vpop.f32.mrb[0].mxu0
    %v327 = vadd.f32 0.0, %v326
    %v328 = vpop.f32.mrb[0].mxu0
    %v329 = vpop.f32.mrb[0].mxu0
    %v330 = vadd.f32 0.0, %v329
    %v331 = vpop.f32.mrb[0].mxu0
    %332 = vmatprep.mubr.bf16.mxu0 0
    %333 = vmatmul.mubr.bf16.gmra.mrb[0].mxu0 %v187
    %v334 = vpop.f32.mrb[0].mxu0
    %v335 = vadd.f32 0.0, %v334
    %v336 = vpop.f32.mrb[0].mxu0
    %v337 = vpop.f32.mrb[0].mxu0
    %v338 = vadd.f32 0.0, %v337
    %v339 = vpop.f32.mrb[0].mxu0
    %340 = vdwg.mxu0
    %v341 = vadd.f32 %v100, %v279
    %v342 = vadd.f32 %v101, %v282
    %v343 = vadd.f32 %v102, %v287
    %v344 = vadd.f32 %v103, %v290
    %v345 = vadd.f32 %v104, %v295
    %v346 = vadd.f32 %v105, %v298
    %v347 = vadd.f32 %v106, %v303
    %v348 = vadd.f32 %v107, %v306
    %v349 = vadd.f32 %v108, %v311
    %v350 = vadd.f32 %v109, %v314
    %v351 = vadd.f32 %v110, %v319
    %v352 = vadd.f32 %v111, %v322
    %v353 = vadd.f32 %v112, %v327
    %v354 = vadd.f32 %v113, %v330
    %v355 = vadd.f32 %v114, %v335
    %v356 = vadd.f32 %v115, %v338
    %357 = vst [vmem:[#allocation2] sm:$0xff] %v341
    %358 = vst [vmem:[#allocation2 + $0x8] sm:$0xff] %v342
    %359 = vst [vmem:[#allocation2 + $0x10] sm:$0xff] %v343
    %360 = vst [vmem:[#allocation2 + $0x18] sm:$0xff] %v344
    %361 = vst [vmem:[#allocation2 + $0x20] sm:$0xff] %v345
    %362 = vst [vmem:[#allocation2 + $0x28] sm:$0xff] %v346
    %363 = vst [vmem:[#allocation2 + $0x30] sm:$0xff] %v347
    %364 = vst [vmem:[#allocation2 + $0x38] sm:$0xff] %v348
    %365 = vst [vmem:[#allocation2 + $0x40] sm:$0xff] %v349
    %366 = vst [vmem:[#allocation2 + $0x48] sm:$0xff] %v350
    %367 = vst [vmem:[#allocation2 + $0x50] sm:$0xff] %v351
    %368 = vst [vmem:[#allocation2 + $0x58] sm:$0xff] %v352
    %369 = vst [vmem:[#allocation2 + $0x60] sm:$0xff] %v353
    %370 = vst [vmem:[#allocation2 + $0x68] sm:$0xff] %v354
    %371 = vst [vmem:[#allocation2 + $0x70] sm:$0xff] %v355
    %372 = vst [vmem:[#allocation2 + $0x78] sm:$0xff] %v356
    // Predicated region
    $region42: #{tpu_custom_call.1} parent=1 // pred_check
      %p373 = pneg %p80
    $region43: #{tpu_custom_call.1} parent=1 // pred_check_branch
      %375 = sbr.rel (%p373) target = $region45
    $region44: #{tpu_custom_call.1} parent=1 // pred_region
      %v376 = vld [vmem:[#allocation2] sm:$0xff]
      %v377 = vld [vmem:[#allocation2 + $0x8] sm:$0xff]
      %v378 = vld [vmem:[#allocation2 + $0x10] sm:$0xff]
      %v379 = vld [vmem:[#allocation2 + $0x18] sm:$0xff]
      %v380 = vld [vmem:[#allocation2 + $0x20] sm:$0xff]
      %v381 = vld [vmem:[#allocation2 + $0x28] sm:$0xff]
      %v382 = vld [vmem:[#allocation2 + $0x30] sm:$0xff]
      %v383 = vld [vmem:[#allocation2 + $0x38] sm:$0xff]
      %v384 = vld [vmem:[#allocation2 + $0x40] sm:$0xff]
      %v385 = vld [vmem:[#allocation2 + $0x48] sm:$0xff]
      %v386 = vld [vmem:[#allocation2 + $0x50] sm:$0xff]
      %v387 = vld [vmem:[#allocation2 + $0x58] sm:$0xff]
      %v388 = vld [vmem:[#allocation2 + $0x60] sm:$0xff]
      %v389 = vld [vmem:[#allocation2 + $0x68] sm:$0xff]
      %v390 = vld [vmem:[#allocation2 + $0x70] sm:$0xff]
      %v391 = vld [vmem:[#allocation2 + $0x78] sm:$0xff]
      %v392 = vld [vmem:[#allocation8] sm:$0xff]
      %v393 = vld [vmem:[#allocation8 + $0x8] sm:$0xff]
      %v394 = vld [vmem:[#allocation8 + $0x10] sm:$0xff]
      %v395 = vld [vmem:[#allocation8 + $0x18] sm:$0xff]
      %v396 = vld [vmem:[#allocation8 + $0x20] sm:$0xff]
      %v397 = vld [vmem:[#allocation8 + $0x28] sm:$0xff]
      %v398 = vld [vmem:[#allocation8 + $0x30] sm:$0xff]
      %v399 = vld [vmem:[#allocation8 + $0x38] sm:$0xff]
      %v400 = vld [vmem:[#allocation8 + $0x40] sm:$0xff]
      %v401 = vld [vmem:[#allocation8 + $0x48] sm:$0xff]
      %v402 = vld [vmem:[#allocation8 + $0x50] sm:$0xff]
      %v403 = vld [vmem:[#allocation8 + $0x58] sm:$0xff]
      %v404 = vld [vmem:[#allocation8 + $0x60] sm:$0xff]
      %v405 = vld [vmem:[#allocation8 + $0x68] sm:$0xff]
      %v406 = vld [vmem:[#allocation8 + $0x70] sm:$0xff]
      %v407 = vld [vmem:[#allocation8 + $0x78] sm:$0xff]
      %v408 = vmul.f32 %v392, %v376
      %v409 = vmul.f32 %v393, %v377
      %v410 = vmul.f32 %v394, %v378
      %v411 = vmul.f32 %v395, %v379
      %v412 = vmul.f32 %v396, %v380
      %v413 = vmul.f32 %v397, %v381
      %v414 = vmul.f32 %v398, %v382
      %v415 = vmul.f32 %v399, %v383
      %v416 = vmul.f32 %v400, %v384
      %v417 = vmul.f32 %v401, %v385
      %v418 = vmul.f32 %v402, %v386
      %v419 = vmul.f32 %v403, %v387
      %v420 = vmul.f32 %v404, %v388
      %v421 = vmul.f32 %v405, %v389
      %v422 = vmul.f32 %v406, %v390
      %v423 = vmul.f32 %v407, %v391
      %v424 = vld [vmem:[#allocation9] sm:$0xff]
      %v425 = vld [vmem:[#allocation9 + $0x8] sm:$0xff]
      %v426 = vld [vmem:[#allocation9 + $0x10] sm:$0xff]
      %v427 = vld [vmem:[#allocation9 + $0x18] sm:$0xff]
      %v428 = vld [vmem:[#allocation9 + $0x20] sm:$0xff]
      %v429 = vld [vmem:[#allocation9 + $0x28] sm:$0xff]
      %v430 = vld [vmem:[#allocation9 + $0x30] sm:$0xff]
      %v431 = vld [vmem:[#allocation9 + $0x38] sm:$0xff]
      %v432 = vld [vmem:[#allocation9 + $0x40] sm:$0xff]
      %v433 = vld [vmem:[#allocation9 + $0x48] sm:$0xff]
      %v434 = vld [vmem:[#allocation9 + $0x50] sm:$0xff]
      %v435 = vld [vmem:[#allocation9 + $0x58] sm:$0xff]
      %v436 = vld [vmem:[#allocation9 + $0x60] sm:$0xff]
      %v437 = vld [vmem:[#allocation9 + $0x68] sm:$0xff]
      %v438 = vld [vmem:[#allocation9 + $0x70] sm:$0xff]
      %v439 = vld [vmem:[#allocation9 + $0x78] sm:$0xff]
      %v440 = vld [vmem:[#allocation9 + $0x80] sm:$0xff]
      %v441 = vld [vmem:[#allocation9 + $0x88] sm:$0xff]
      %v442 = vld [vmem:[#allocation9 + $0x90] sm:$0xff]
      %v443 = vld [vmem:[#allocation9 + $0x98] sm:$0xff]
      %v444 = vld [vmem:[#allocation9 + $0xa0] sm:$0xff]
      %v445 = vld [vmem:[#allocation9 + $0xa8] sm:$0xff]
      %v446 = vld [vmem:[#allocation9 + $0xb0] sm:$0xff]
      %v447 = vld [vmem:[#allocation9 + $0xb8] sm:$0xff]
      %v448 = vld [vmem:[#allocation9 + $0xc0] sm:$0xff]
      %v449 = vld [vmem:[#allocation9 + $0xc8] sm:$0xff]
      %v450 = vld [vmem:[#allocation9 + $0xd0] sm:$0xff]
      %v451 = vld [vmem:[#allocation9 + $0xd8] sm:$0xff]
      %v452 = vld [vmem:[#allocation9 + $0xe0] sm:$0xff]
      %v453 = vld [vmem:[#allocation9 + $0xe8] sm:$0xff]
      %v454 = vld [vmem:[#allocation9 + $0xf0] sm:$0xff]
      %v455 = vld [vmem:[#allocation9 + $0xf8] sm:$0xff]
      %v456 = vld [vmem:[#allocation9 + $0x100] sm:$0xff]
      %v457 = vld [vmem:[#allocation9 + $0x108] sm:$0xff]
      %v458 = vld [vmem:[#allocation9 + $0x110] sm:$0xff]
      %v459 = vld [vmem:[#allocation9 + $0x118] sm:$0xff]
      %v460 = vld [vmem:[#allocation9 + $0x120] sm:$0xff]
      %v461 = vld [vmem:[#allocation9 + $0x128] sm:$0xff]
      %v462 = vld [vmem:[#allocation9 + $0x130] sm:$0xff]
      %v463 = vld [vmem:[#allocation9 + $0x138] sm:$0xff]
      %v464 = vld [vmem:[#allocation9 + $0x140] sm:$0xff]
      %v465 = vld [vmem:[#allocation9 + $0x148] sm:$0xff]
      %v466 = vld [vmem:[#allocation9 + $0x150] sm:$0xff]
      %v467 = vld [vmem:[#allocation9 + $0x158] sm:$0xff]
      %v468 = vld [vmem:[#allocation9 + $0x160] sm:$0xff]
      %v469 = vld [vmem:[#allocation9 + $0x168] sm:$0xff]
      %v470 = vld [vmem:[#allocation9 + $0x170] sm:$0xff]
      %v471 = vld [vmem:[#allocation9 + $0x178] sm:$0xff]
      %v472 = vld [vmem:[#allocation9 + $0x180] sm:$0xff]
      %v473 = vld [vmem:[#allocation9 + $0x188] sm:$0xff]
      %v474 = vld [vmem:[#allocation9 + $0x190] sm:$0xff]
      %v475 = vld [vmem:[#allocation9 + $0x198] sm:$0xff]
      %v476 = vld [vmem:[#allocation9 + $0x1a0] sm:$0xff]
      %v477 = vld [vmem:[#allocation9 + $0x1a8] sm:$0xff]
      %v478 = vld [vmem:[#allocation9 + $0x1b0] sm:$0xff]
      %v479 = vld [vmem:[#allocation9 + $0x1b8] sm:$0xff]
      %v480 = vld [vmem:[#allocation9 + $0x1c0] sm:$0xff]
      %v481 = vld [vmem:[#allocation9 + $0x1c8] sm:$0xff]
      %v482 = vld [vmem:[#allocation9 + $0x1d0] sm:$0xff]
      %v483 = vld [vmem:[#allocation9 + $0x1d8] sm:$0xff]
      %v484 = vld [vmem:[#allocation9 + $0x1e0] sm:$0xff]
      %v485 = vld [vmem:[#allocation9 + $0x1e8] sm:$0xff]
      %v486 = vld [vmem:[#allocation9 + $0x1f0] sm:$0xff]
      %v487 = vld [vmem:[#allocation9 + $0x1f8] sm:$0xff]
      %v488 = vld [vmem:[%s4] sm:$0x3]
      %v490 = vlaneseq
      %v491 = vshrl.u32 %v490, 7
      %v492 = vsub.s32 0, %v491
      %v493 = vrot.slane %v488, %v492
      %v494 = vlaneseq
      %v495 = vshrl.u32 %v494, 7
      %v496 = vsub.s32 1, %v495
      %v497 = vrot.slane %v488, %v496
      %500 = vmatprep.subr.mxu0 %v425
      %501 = vmatpush1.msra.mxu0 %v424
      %502 = vmatprep.subr.mxu0 %v427
      %503 = vmatpush1.msra.mxu0 %v426
      %504 = vmatprep.subr.mxu0 %v429
      %505 = vmatpush1.msra.mxu0 %v428
      %506 = vmatprep.subr.mxu0 %v431
      %507 = vmatpush1.msra.mxu0 %v430
      %508 = vmatprep.subr.mxu0 %v433
      %509 = vmatpush1.msra.mxu0 %v432
      %510 = vmatprep.subr.mxu0 %v435
      %511 = vmatpush1.msra.mxu0 %v434
      %512 = vmatprep.subr.mxu0 %v437
      %513 = vmatpush1.msra.mxu0 %v436
      %514 = vmatprep.subr.mxu0 %v439
      %515 = vmatpush1.msra.mxu0 %v438
      %516 = vmatprep.subr.mxu0 %v441
      %517 = vmatpush1.msra.mxu0 %v440
      %518 = vmatprep.subr.mxu0 %v443
      %519 = vmatpush1.msra.mxu0 %v442
      %520 = vmatprep.subr.mxu0 %v445
      %521 = vmatpush1.msra.mxu0 %v444
      %522 = vmatprep.subr.mxu0 %v447
      %523 = vmatpush1.msra.mxu0 %v446
      %524 = vmatprep.subr.mxu0 %v449
      %525 = vmatpush1.msra.mxu0 %v448
      %526 = vmatprep.subr.mxu0 %v451
      %527 = vmatpush1.msra.mxu0 %v450
      %528 = vmatprep.subr.mxu0 %v453
      %529 = vmatpush1.msra.mxu0 %v452
      %530 = vmatprep.subr.mxu0 %v455
      %531 = vmatpush1.msra.mxu0 %v454
      %532 = vmatprep.subr.mxu0 %v457
      %533 = vmatpush1.msra.mxu0 %v456
      %534 = vmatprep.subr.mxu0 %v459
      %535 = vmatpush1.msra.mxu0 %v458
      %536 = vmatprep.subr.mxu0 %v461
      %537 = vmatpush1.msra.mxu0 %v460
      %538 = vmatprep.subr.mxu0 %v463
      %539 = vmatpush1.msra.mxu0 %v462
      %540 = vmatprep.subr.mxu0 %v465
      %541 = vmatpush1.msra.mxu0 %v464
      %542 = vmatprep.subr.mxu0 %v467
      %543 = vmatpush1.msra.mxu0 %v466
      %544 = vmatprep.subr.mxu0 %v469
      %545 = vmatpush1.msra.mxu0 %v468
      %546 = vmatprep.subr.mxu0 %v471
      %547 = vmatpush1.msra.mxu0 %v470
      %548 = vmatprep.subr.mxu0 %v473
      %549 = vmatpush1.msra.mxu0 %v472
      %550 = vmatprep.subr.mxu0 %v475
      %551 = vmatpush1.msra.mxu0 %v474
      %552 = vmatprep.subr.mxu0 %v477
      %553 = vmatpush1.msra.mxu0 %v476
      %554 = vmatprep.subr.mxu0 %v479
      %555 = vmatpush1.msra.mxu0 %v478
      %556 = vmatprep.subr.mxu0 %v481
      %557 = vmatpush1.msra.mxu0 %v480
      %558 = vmatprep.subr.mxu0 %v483
      %559 = vmatpush1.msra.mxu0 %v482
      %560 = vmatprep.subr.mxu0 %v485
      %561 = vmatpush1.msra.mxu0 %v484
      %562 = vmatprep.subr.mxu0 %v487
      %563 = vmatpush1.msra.mxu0 %v486
      %564 = vmatprep.mubr.f32.mxu0 %v408
      %565 = vmatmul.mubr.f32.gmra.mrb[0].mxu0 %v376
      %v566 = vpop.f32.mrb[0].mxu0
      %v567 = vadd.f32 %v493, %v566
      %v568 = vpop.f32.mrb[0].mxu0
      %v569 = vadd.f32 %v497, %v568
      %570 = vmatprep.mubr.f32.mxu0 %v409
      %571 = vmatmul.mubr.f32.gmra.mrb[0].mxu0 %v377
      %v572 = vpop.f32.mrb[0].mxu0
      %v573 = vadd.f32 %v493, %v572
      %v574 = vpop.f32.mrb[0].mxu0
      %v575 = vadd.f32 %v497, %v574
      %576 = vmatprep.mubr.f32.mxu0 %v410
      %577 = vmatmul.mubr.f32.gmra.mrb[0].mxu0 %v378
      %v578 = vpop.f32.mrb[0].mxu0
      %v579 = vadd.f32 %v493, %v578
      %v580 = vpop.f32.mrb[0].mxu0
      %v581 = vadd.f32 %v497, %v580
      %582 = vmatprep.mubr.f32.mxu0 %v411
      %583 = vmatmul.mubr.f32.gmra.mrb[0].mxu0 %v379
      %v584 = vpop.f32.mrb[0].mxu0
      %v585 = vadd.f32 %v493, %v584
      %v586 = vpop.f32.mrb[0].mxu0
      %v587 = vadd.f32 %v497, %v586
      %588 = vmatprep.mubr.f32.mxu0 %v412
      %589 = vmatmul.mubr.f32.gmra.mrb[0].mxu0 %v380
      %v590 = vpop.f32.mrb[0].mxu0
      %v591 = vadd.f32 %v493, %v590
      %v592 = vpop.f32.mrb[0].mxu0
      %v593 = vadd.f32 %v497, %v592
      %594 = vmatprep.mubr.f32.mxu0 %v413
      %595 = vmatmul.mubr.f32.gmra.mrb[0].mxu0 %v381
      %v596 = vpop.f32.mrb[0].mxu0
      %v597 = vadd.f32 %v493, %v596
      %v598 = vpop.f32.mrb[0].mxu0
      %v599 = vadd.f32 %v497, %v598
      %600 = vmatprep.mubr.f32.mxu0 %v414
      %601 = vmatmul.mubr.f32.gmra.mrb[0].mxu0 %v382
      %v602 = vpop.f32.mrb[0].mxu0
      %v603 = vadd.f32 %v493, %v602
      %v604 = vpop.f32.mrb[0].mxu0
      %v605 = vadd.f32 %v497, %v604
      %606 = vmatprep.mubr.f32.mxu0 %v415
      %607 = vmatmul.mubr.f32.gmra.mrb[0].mxu0 %v383
      %v608 = vpop.f32.mrb[0].mxu0
      %v609 = vadd.f32 %v493, %v608
      %v610 = vpop.f32.mrb[0].mxu0
      %v611 = vadd.f32 %v497, %v610
      %612 = vmatprep.mubr.f32.mxu0 %v416
      %613 = vmatmul.mubr.f32.gmra.mrb[0].mxu0 %v384
      %v614 = vpop.f32.mrb[0].mxu0
      %v615 = vadd.f32 %v493, %v614
      %v616 = vpop.f32.mrb[0].mxu0
      %v617 = vadd.f32 %v497, %v616
      %618 = vmatprep.mubr.f32.mxu0 %v417
      %619 = vmatmul.mubr.f32.gmra.mrb[0].mxu0 %v385
      %v620 = vpop.f32.mrb[0].mxu0
      %v621 = vadd.f32 %v493, %v620
      %v622 = vpop.f32.mrb[0].mxu0
      %v623 = vadd.f32 %v497, %v622
      %624 = vmatprep.mubr.f32.mxu0 %v418
      %625 = vmatmul.mubr.f32.gmra.mrb[0].mxu0 %v386
      %v626 = vpop.f32.mrb[0].mxu0
      %v627 = vadd.f32 %v493, %v626
      %v628 = vpop.f32.mrb[0].mxu0
      %v629 = vadd.f32 %v497, %v628
      %630 = vmatprep.mubr.f32.mxu0 %v419
      %631 = vmatmul.mubr.f32.gmra.mrb[0].mxu0 %v387
      %v632 = vpop.f32.mrb[0].mxu0
      %v633 = vadd.f32 %v493, %v632
      %v634 = vpop.f32.mrb[0].mxu0
      %v635 = vadd.f32 %v497, %v634
      %636 = vmatprep.mubr.f32.mxu0 %v420
      %637 = vmatmul.mubr.f32.gmra.mrb[0].mxu0 %v388
      %v638 = vpop.f32.mrb[0].mxu0
      %v639 = vadd.f32 %v493, %v638
      %v640 = vpop.f32.mrb[0].mxu0
      %v641 = vadd.f32 %v497, %v640
      %642 = vmatprep.mubr.f32.mxu0 %v421
      %643 = vmatmul.mubr.f32.gmra.mrb[0].mxu0 %v389
      %v644 = vpop.f32.mrb[0].mxu0
      %v645 = vadd.f32 %v493, %v644
      %v646 = vpop.f32.mrb[0].mxu0
      %v647 = vadd.f32 %v497, %v646
      %648 = vmatprep.mubr.f32.mxu0 %v422
      %649 = vmatmul.mubr.f32.gmra.mrb[0].mxu0 %v390
      %v650 = vpop.f32.mrb[0].mxu0
      %v651 = vadd.f32 %v493, %v650
      %v652 = vpop.f32.mrb[0].mxu0
      %v653 = vadd.f32 %v497, %v652
      %654 = vmatprep.mubr.f32.mxu0 %v423
      %655 = vmatmul.mubr.f32.gmra.mrb[0].mxu0 %v391
      %v656 = vpop.f32.mrb[0].mxu0
      %v657 = vadd.f32 %v493, %v656
      %v658 = vpop.f32.mrb[0].mxu0
      %v659 = vadd.f32 %v497, %v658
      %660 = vdwg.mxu0
      %vm661 = vcmp.gt.f32.partialorder %v567, 0.0
      %vm662 = vcmp.gt.f32.partialorder %v569, 0.0
      %vm663 = vcmp.gt.f32.partialorder %v573, 0.0
      %vm664 = vcmp.gt.f32.partialorder %v575, 0.0
      %vm665 = vcmp.gt.f32.partialorder %v579, 0.0
      %vm666 = vcmp.gt.f32.partialorder %v581, 0.0
      %vm667 = vcmp.gt.f32.partialorder %v585, 0.0
      %vm668 = vcmp.gt.f32.partialorder %v587, 0.0
      %vm669 = vcmp.gt.f32.partialorder %v591, 0.0
      %vm670 = vcmp.gt.f32.partialorder %v593, 0.0
      %vm671 = vcmp.gt.f32.partialorder %v597, 0.0
      %vm672 = vcmp.gt.f32.partialorder %v599, 0.0
      %vm673 = vcmp.gt.f32.partialorder %v603, 0.0
      %vm674 = vcmp.gt.f32.partialorder %v605, 0.0
      %vm675 = vcmp.gt.f32.partialorder %v609, 0.0
      %vm676 = vcmp.gt.f32.partialorder %v611, 0.0
      %vm677 = vcmp.gt.f32.partialorder %v615, 0.0
      %vm678 = vcmp.gt.f32.partialorder %v617, 0.0
      %vm679 = vcmp.gt.f32.partialorder %v621, 0.0
      %vm680 = vcmp.gt.f32.partialorder %v623, 0.0
      %vm681 = vcmp.gt.f32.partialorder %v627, 0.0
      %vm682 = vcmp.gt.f32.partialorder %v629, 0.0
      %vm683 = vcmp.gt.f32.partialorder %v633, 0.0
      %vm684 = vcmp.gt.f32.partialorder %v635, 0.0
      %vm685 = vcmp.gt.f32.partialorder %v639, 0.0
      %vm686 = vcmp.gt.f32.partialorder %v641, 0.0
      %vm687 = vcmp.gt.f32.partialorder %v645, 0.0
      %vm688 = vcmp.gt.f32.partialorder %v647, 0.0
      %vm689 = vcmp.gt.f32.partialorder %v651, 0.0
      %vm690 = vcmp.gt.f32.partialorder %v653, 0.0
      %vm691 = vcmp.gt.f32.partialorder %v657, 0.0
      %vm692 = vcmp.gt.f32.partialorder %v659, 0.0
      %v693 = vmul.f32 %v567, 0.01
      %v694 = vmul.f32 %v569, 0.01
      %v695 = vmul.f32 %v573, 0.01
      %v696 = vmul.f32 %v575, 0.01
      %v697 = vmul.f32 %v579, 0.01
      %v698 = vmul.f32 %v581, 0.01
      %v699 = vmul.f32 %v585, 0.01
      %v700 = vmul.f32 %v587, 0.01
      %v701 = vmul.f32 %v591, 0.01
      %v702 = vmul.f32 %v593, 0.01
      %v703 = vmul.f32 %v597, 0.01
      %v704 = vmul.f32 %v599, 0.01
      %v705 = vmul.f32 %v603, 0.01
      %v706 = vmul.f32 %v605, 0.01
      %v707 = vmul.f32 %v609, 0.01
      %v708 = vmul.f32 %v611, 0.01
      %v709 = vmul.f32 %v615, 0.01
      %v710 = vmul.f32 %v617, 0.01
      %v711 = vmul.f32 %v621, 0.01
      %v712 = vmul.f32 %v623, 0.01
      %v713 = vmul.f32 %v627, 0.01
      %v714 = vmul.f32 %v629, 0.01
      %v715 = vmul.f32 %v633, 0.01
      %v716 = vmul.f32 %v635, 0.01
      %v717 = vmul.f32 %v639, 0.01
      %v718 = vmul.f32 %v641, 0.01
      %v719 = vmul.f32 %v645, 0.01
      %v720 = vmul.f32 %v647, 0.01
      %v721 = vmul.f32 %v651, 0.01
      %v722 = vmul.f32 %v653, 0.01
      %v723 = vmul.f32 %v657, 0.01
      %v724 = vmul.f32 %v659, 0.01
      %v725 = vsel %vm661, %v567, %v693
      %v726 = vsel %vm662, %v569, %v694
      %v727 = vsel %vm663, %v573, %v695
      %v728 = vsel %vm664, %v575, %v696
      %v729 = vsel %vm665, %v579, %v697
      %v730 = vsel %vm666, %v581, %v698
      %v731 = vsel %vm667, %v585, %v699
      %v732 = vsel %vm668, %v587, %v700
      %v733 = vsel %vm669, %v591, %v701
      %v734 = vsel %vm670, %v593, %v702
      %v735 = vsel %vm671, %v597, %v703
      %v736 = vsel %vm672, %v599, %v704
      %v737 = vsel %vm673, %v603, %v705
      %v738 = vsel %vm674, %v605, %v706
      %v739 = vsel %vm675, %v609, %v707
      %v740 = vsel %vm676, %v611, %v708
      %v741 = vsel %vm677, %v615, %v709
      %v742 = vsel %vm678, %v617, %v710
      %v743 = vsel %vm679, %v621, %v711
      %v744 = vsel %vm680, %v623, %v712
      %v745 = vsel %vm681, %v627, %v713
      %v746 = vsel %vm682, %v629, %v714
      %v747 = vsel %vm683, %v633, %v715
      %v748 = vsel %vm684, %v635, %v716
      %v749 = vsel %vm685, %v639, %v717
      %v750 = vsel %vm686, %v641, %v718
      %v751 = vsel %vm687, %v645, %v719
      %v752 = vsel %vm688, %v647, %v720
      %v753 = vsel %vm689, %v651, %v721
      %v754 = vsel %vm690, %v653, %v722
      %v755 = vsel %vm691, %v657, %v723
      %v756 = vsel %vm692, %v659, %v724
      %v757 = vadd.f32 %v725, %v726
      %v758 = vadd.f32 %v727, %v728
      %v759 = vadd.f32 %v729, %v730
      %v760 = vadd.f32 %v731, %v732
      %v761 = vadd.f32 %v733, %v734
      %v762 = vadd.f32 %v735, %v736
      %v763 = vadd.f32 %v737, %v738
      %v764 = vadd.f32 %v739, %v740
      %v765 = vadd.f32 %v741, %v742
      %v766 = vadd.f32 %v743, %v744
      %v767 = vadd.f32 %v745, %v746
      %v768 = vadd.f32 %v747, %v748
      %v769 = vadd.f32 %v749, %v750
      %v770 = vadd.f32 %v751, %v752
      %v771 = vadd.f32 %v753, %v754
      %v772 = vadd.f32 %v755, %v756
      %773 = vst [vmem:[#allocation11] sm:$0xff] %v757
      %774 = vst [vmem:[#allocation11 + $0x8] sm:$0xff] %v758
      %775 = vst [vmem:[#allocation11 + $0x10] sm:$0xff] %v759
      %776 = vst [vmem:[#allocation11 + $0x18] sm:$0xff] %v760
      %777 = vst [vmem:[#allocation11 + $0x20] sm:$0xff] %v761
      %778 = vst [vmem:[#allocation11 + $0x28] sm:$0xff] %v762
      %779 = vst [vmem:[#allocation11 + $0x30] sm:$0xff] %v763
      %780 = vst [vmem:[#allocation11 + $0x38] sm:$0xff] %v764
      %781 = vst [vmem:[#allocation11 + $0x40] sm:$0xff] %v765
      %782 = vst [vmem:[#allocation11 + $0x48] sm:$0xff] %v766
      %783 = vst [vmem:[#allocation11 + $0x50] sm:$0xff] %v767
      %784 = vst [vmem:[#allocation11 + $0x58] sm:$0xff] %v768
      %785 = vst [vmem:[#allocation11 + $0x60] sm:$0xff] %v769
      %786 = vst [vmem:[#allocation11 + $0x68] sm:$0xff] %v770
      %787 = vst [vmem:[#allocation11 + $0x70] sm:$0xff] %v771
      %788 = vst [vmem:[#allocation11 + $0x78] sm:$0xff] %v772
      %v789 = vmul.f32 %v757, %v757
      %v790 = vmul.f32 %v758, %v758
      %v791 = vmul.f32 %v759, %v759
      %v792 = vmul.f32 %v760, %v760
      %v793 = vmul.f32 %v761, %v761
      %v794 = vmul.f32 %v762, %v762
      %v795 = vmul.f32 %v763, %v763
      %v796 = vmul.f32 %v764, %v764
      %v797 = vmul.f32 %v765, %v765
      %v798 = vmul.f32 %v766, %v766
      %v799 = vmul.f32 %v767, %v767
      %v800 = vmul.f32 %v768, %v768
      %v801 = vmul.f32 %v769, %v769
      %v802 = vmul.f32 %v770, %v770
      %v803 = vmul.f32 %v771, %v771
      %v804 = vmul.f32 %v772, %v772
      %805 = vadd.xlane.f32.xlu0 %v789
      %v806 = vpop.xlane.xlu0 %805
      %807 = vadd.xlane.f32.xlu0 %v790
      %v808 = vpop.xlane.xlu0 %807
      %809 = vadd.xlane.f32.xlu0 %v791
      %v810 = vpop.xlane.xlu0 %809
      %811 = vadd.xlane.f32.xlu0 %v792
      %v812 = vpop.xlane.xlu0 %811
      %813 = vadd.xlane.f32.xlu0 %v793
      %v814 = vpop.xlane.xlu0 %813
      %815 = vadd.xlane.f32.xlu0 %v794
      %v816 = vpop.xlane.xlu0 %815
      %817 = vadd.xlane.f32.xlu0 %v795
      %v818 = vpop.xlane.xlu0 %817
      %819 = vadd.xlane.f32.xlu0 %v796
      %v820 = vpop.xlane.xlu0 %819
      %821 = vadd.xlane.f32.xlu0 %v797
      %v822 = vpop.xlane.xlu0 %821
      %823 = vadd.xlane.f32.xlu0 %v798
      %v824 = vpop.xlane.xlu0 %823
      %825 = vadd.xlane.f32.xlu0 %v799
      %v826 = vpop.xlane.xlu0 %825
      %827 = vadd.xlane.f32.xlu0 %v800
      %v828 = vpop.xlane.xlu0 %827
      %829 = vadd.xlane.f32.xlu0 %v801
      %v830 = vpop.xlane.xlu0 %829
      %831 = vadd.xlane.f32.xlu0 %v802
      %v832 = vpop.xlane.xlu0 %831
      %833 = vadd.xlane.f32.xlu0 %v803
      %v834 = vpop.xlane.xlu0 %833
      %835 = vadd.xlane.f32.xlu0 %v804
      %v836 = vpop.xlane.xlu0 %835
      %v837 = vmax.f32 %v806, 1e-24
      %v838 = vmax.f32 %v808, 1e-24
      %v839 = vmax.f32 %v810, 1e-24
      %v840 = vmax.f32 %v812, 1e-24
      %v841 = vmax.f32 %v814, 1e-24
      %v842 = vmax.f32 %v816, 1e-24
      %v843 = vmax.f32 %v818, 1e-24
      %v844 = vmax.f32 %v820, 1e-24
      %v845 = vmax.f32 %v822, 1e-24
      %v846 = vmax.f32 %v824, 1e-24
      %v847 = vmax.f32 %v826, 1e-24
      %v848 = vmax.f32 %v828, 1e-24
      %v849 = vmax.f32 %v830, 1e-24
      %v850 = vmax.f32 %v832, 1e-24
      %v851 = vmax.f32 %v834, 1e-24
      %v852 = vmax.f32 %v836, 1e-24
      %v853 = vrsqrt.pop %v837
      %v854 = vrsqrt.pop %v838
      %v855 = vrsqrt.pop %v839
      %v856 = vrsqrt.pop %v840
      %v857 = vrsqrt.pop %v841
      %v858 = vrsqrt.pop %v842
      %v859 = vrsqrt.pop %v843
      %v860 = vrsqrt.pop %v844
      %v861 = vrsqrt.pop %v845
      %v862 = vrsqrt.pop %v846
      %v863 = vrsqrt.pop %v847
      %v864 = vrsqrt.pop %v848
      %v865 = vrsqrt.pop %v849
      %v866 = vrsqrt.pop %v850
      %v867 = vrsqrt.pop %v851
      %v868 = vrsqrt.pop %v852
      %v869 = vmul.f32 %v757, %v853
      %v870 = vmul.f32 %v758, %v854
      %v871 = vmul.f32 %v759, %v855
      %v872 = vmul.f32 %v760, %v856
      %v873 = vmul.f32 %v761, %v857
      %v874 = vmul.f32 %v762, %v858
      %v875 = vmul.f32 %v763, %v859
      %v876 = vmul.f32 %v764, %v860
      %v877 = vmul.f32 %v765, %v861
      %v878 = vmul.f32 %v766, %v862
      %v879 = vmul.f32 %v767, %v863
      %v880 = vmul.f32 %v768, %v864
      %v881 = vmul.f32 %v769, %v865
      %v882 = vmul.f32 %v770, %v866
      %v883 = vmul.f32 %v771, %v867
      %v884 = vmul.f32 %v772, %v868
      %885 = vst [vmem:[#allocation12] sm:$0xff] %v869
      %886 = vst [vmem:[#allocation12 + $0x8] sm:$0xff] %v870
      %887 = vst [vmem:[#allocation12 + $0x10] sm:$0xff] %v871
      %888 = vst [vmem:[#allocation12 + $0x18] sm:$0xff] %v872
      %889 = vst [vmem:[#allocation12 + $0x20] sm:$0xff] %v873
      %890 = vst [vmem:[#allocation12 + $0x28] sm:$0xff] %v874
      %891 = vst [vmem:[#allocation12 + $0x30] sm:$0xff] %v875
      %892 = vst [vmem:[#allocation12 + $0x38] sm:$0xff] %v876
      %893 = vst [vmem:[#allocation12 + $0x40] sm:$0xff] %v877
      %894 = vst [vmem:[#allocation12 + $0x48] sm:$0xff] %v878
      %895 = vst [vmem:[#allocation12 + $0x50] sm:$0xff] %v879
      %896 = vst [vmem:[#allocation12 + $0x58] sm:$0xff] %v880
      %897 = vst [vmem:[#allocation12 + $0x60] sm:$0xff] %v881
      %898 = vst [vmem:[#allocation12 + $0x68] sm:$0xff] %v882
      %899 = vst [vmem:[#allocation12 + $0x70] sm:$0xff] %v883
      %900 = vst [vmem:[#allocation12 + $0x78] sm:$0xff] %v884
    $region45: #{tpu_custom_call.1} parent=1 // pred_fallthru
      _
    // Predicated region
    $region46: #{tpu_custom_call.1} parent=1 // pred_check
      _
    $region47: #{tpu_custom_call.1} parent=1 // pred_check_branch
      %902 = sbr.rel (0) target = $region49
    $region48: #{tpu_custom_call.1} parent=1 // pred_region
      %s904 = ssub.s32 2048, 2048
      %905 = vsyncadd [#allocation5], %s904
      %s906 = sshll.u32 [#allocation11], 4
      %s907 = int_to_ptr.vmem [resolvable:$true] %s906
      %912 = dma.vmem_to_hbm [thread:$0]  %s907, 2048, %s5, [#allocation5], 128, 128, 8
    $region49: #{tpu_custom_call.1} parent=1 // pred_fallthru
      _
    // Predicated region
    $region50: #{tpu_custom_call.1} parent=1 // pred_check
      _
    $region51: #{tpu_custom_call.1} parent=1 // pred_check_branch
      %914 = sbr.rel (0) target = $region53
    $region52: #{tpu_custom_call.1} parent=1 // pred_region
      %s916 = ssub.s32 2048, 2048
      %917 = vsyncadd [#allocation13], %s916
      %s918 = sshll.u32 [#allocation12], 4
      %s919 = int_to_ptr.vmem [resolvable:$true] %s918
      %924 = dma.vmem_to_hbm [thread:$0]  %s919, 2048, %s6, [#allocation13], 128, 128, 8
    $region53: #{tpu_custom_call.1} parent=1 // pred_fallthru
      _
    // Predicated region
    $region54: #{tpu_custom_call.1} parent=1 // pred_check
      _
    $region55: #{tpu_custom_call.1} parent=1 // pred_check_branch
      %926 = sbr.rel (0) target = $region57
    $region56: #{tpu_custom_call.1} parent=1 // pred_region
      %927 = dma.done [#allocation5], 2048
    $region57: #{tpu_custom_call.1} parent=1 // pred_fallthru
      _
    // Predicated region
    $region58: #{tpu_custom_call.1} parent=1 // pred_check
      _
    $region59: #{tpu_custom_call.1} parent=1 // pred_check_branch
      %929 = sbr.rel (0) target = $region61
    $region60: #{tpu_custom_call.1} parent=1 // pred_region
      %930 = dma.done [#allocation13], 2048
    $region61: #{tpu_custom_call.1} parent=1 // pred_fallthru
      _
    %931 = vsyncpa [#allocation4], 1
    %932 = vsyncpa [#allocation7], 1
    %933 = vsyncpa [#allocation10], 1
    %934 = vsyncpa [#allocation5], 1
    %935 = vsyncpa [#allocation13], 1

</llo_original>
